<compile_context>
chip_gen: v6e
topology: v6e:2x2x1
jax: 0.10.0
libtpu: 0.0.40
codegen_flags: <defaults>
</compile_context>

<pallas_src>
import functools

import jax
import jax.numpy as jnp
from jax import lax
from jax.experimental import pallas as pl
from jax.experimental.pallas import tpu as pltpu

EPS = 1e-5


# --------------------------------------------------------------------------
# Kernels
# --------------------------------------------------------------------------
def _stats_kernel(pT_ref, w_ref, stats_ref):
    # pT_ref:    (Kp8, THW)  bf16 patches: K on sublanes, spatial on lanes
    # w_ref:     (Cp8, Kp8)  bf16 conv weight (resident across the grid)
    # stats_ref: (Cp8, 2)    f32 per-tile (sum, sum_sq) over spatial positions
    z = jnp.dot(w_ref[...], pT_ref[...],
                preferred_element_type=jnp.float32)        # (Cp8, THW) f32
    # Two direct slice stores (no concatenate -> no sublane relayout); the
    # reductions are along lanes (XLU slot).
    stats_ref[:, 0:1] = jnp.sum(z, axis=1, keepdims=True)
    stats_ref[:, 1:2] = jnp.sum(z * z, axis=1, keepdims=True)


def _norm_kernel(pT_ref, w_ref, scale_ref, shift_ref, o_ref):
    # Recompute the cheap GEMM and apply the folded BN epilogue:
    #   o = conv(x) * scale + shift, channels on sublanes, spatial on lanes.
    z = jnp.dot(w_ref[...], pT_ref[...],
                preferred_element_type=jnp.float32)        # (Cp8, THW) f32
    o_ref[...] = z * scale_ref[...] + shift_ref[...]


# --------------------------------------------------------------------------
# Host-side helpers
# --------------------------------------------------------------------------
def _round_up(x, m):
    return ((x + m - 1) // m) * m


def _vmem_capacity_bytes():
    try:
        return int(pltpu.get_tpu_info().vmem_capacity_bytes)
    except Exception:
        return 64 << 20          # conservative: v7x per-TensorCore VMEM


def _choose_tile_hw(HWp, N, Kp8, Cp8, vmem_bytes):
    """Largest 128-multiple divisor of HWp that fits VMEM and keeps >=4 grid steps."""
    budget = max(min(vmem_bytes, 64 << 20) // 4, 1 << 20)
    # double-buffered patch tile + double-buffered out tile + f32 z scratch
    per_col = 2 * (Kp8 * 2) + 2 * (Cp8 * 4) + Cp8 * 4
    cap = max(128, (budget // per_col) // 128 * 128)
    cands = [t for t in range(128, HWp + 1, 128) if HWp % t == 0 and t <= cap]
    if not cands:
        return 128
    good = [t for t in cands if N * (HWp // t) >= 4]   # megacore + pipelining
    return max(good) if good else max(cands)


def _im2col_nkm(x, kh, kw, stride, padding, dilation):
    """x: (N, C, H, W) -> patches (N, C*kh*kw, Ho*Wo); K ordered to match the
    PyTorch weight layout (Cout, Cin, kh, kw) flattened over (Cin, kh, kw)."""
    N, C, H, W = x.shape
    xp = jnp.pad(x, ((0, 0), (0, 0), (padding, padding), (padding, padding)))
    Ho = (H + 2 * padding - dilation * (kh - 1) - 1) // stride + 1
    Wo = (W + 2 * padding - dilation * (kw - 1) - 1) // stride + 1
    cols = []
    for i in range(kh):
        for j in range(kw):
            hi, wj = i * dilation, j * dilation
            cols.append(
                xp[:, :, hi:hi + stride * Ho:stride, wj:wj + stride * Wo:stride])
    p = jnp.stack(cols, axis=2)                     # (N, C, kh*kw, Ho, Wo)
    return p.reshape(N, C * kh * kw, Ho * Wo), Ho, Wo


# --------------------------------------------------------------------------
# Wrapper
# --------------------------------------------------------------------------
def conv2d_batchnorm(x, weight, conv_bias, gamma, beta, *,
                     stride, padding, dilation, tile_hw=None):
    """x: (N, Cin, H, W) f32; weight: (Cout, Cin, kh, kw); returns NCHW f32."""
    del conv_bias  # inert: a per-channel constant cancels under training-mode BN
    N, Cin, H, W = x.shape
    Cout, _, kh, kw = weight.shape

    # im2col in bf16 (halves the HBM traffic of the patch intermediate).
    pT, Ho, Wo = _im2col_nkm(x.astype(jnp.bfloat16), kh, kw,
                             stride, padding, dilation)
    _, K, HW = pT.shape

    Kp8 = _round_up(K, 8)        # contraction dim on sublanes: 8-align only
    Cp8 = _round_up(Cout, 8)     # output channels on sublanes: 8-align only
    HWp = _round_up(HW, 128)     # spatial positions on lanes: 128-align only

    vmem_bytes = _vmem_capacity_bytes()
    thw = tile_hw if tile_hw is not None else _choose_tile_hw(
        HWp, N, Kp8, Cp8, vmem_bytes)
    assert thw % 128 == 0 and HWp % thw == 0
    n_hw = HWp // thw
    vmem_limit = int(min(vmem_bytes // 2, 48 << 20))

    # Zero padding is inert: padded K rows / spatial columns contribute 0 to
    # the GEMM and to both BN partial sums; padded channels are sliced off.
    pT_p = jnp.pad(pT, ((0, 0), (0, Kp8 - K), (0, HWp - HW)))
    w_p = jnp.pad(weight.reshape(Cout, K).astype(jnp.bfloat16),
                  ((0, Cp8 - Cout), (0, Kp8 - K)))

    params = pltpu.CompilerParams(
        dimension_semantics=("parallel", "parallel"),
        vmem_limit_bytes=vmem_limit)

    patch_spec = pl.BlockSpec((None, Kp8, thw), lambda n, j: (n, 0, j))
    wgt_spec = pl.BlockSpec((Cp8, Kp8), lambda n, j: (0, 0))

    # Pass 1: per-tile partial BN statistics (no conv output hits HBM).
    stats = pl.pallas_call(
        _stats_kernel,
        out_shape=jax.ShapeDtypeStruct((N, n_hw, Cp8, 2), jnp.float32),
        grid=(N, n_hw),
        in_specs=[patch_spec, wgt_spec],
        out_specs=pl.BlockSpec((None, None, Cp8, 2), lambda n, j: (n, j, 0, 0)),
        compiler_params=params,
    )(pT_p, w_p)

    # Tiny per-channel reduction + fold BN into a single scale/shift (f32).
    sums = jnp.sum(stats, axis=(0, 1))               # (Cp8, 2)
    M = N * HW
    mean = sums[:, 0] / float(M)
    var = jnp.maximum(sums[:, 1] / float(M) - mean * mean, 0.0)
    gamma_p = jnp.pad(gamma.astype(jnp.float32), (0, Cp8 - Cout))
    beta_p = jnp.pad(beta.astype(jnp.float32), (0, Cp8 - Cout))
    scale = gamma_p * lax.rsqrt(var + EPS)
    shift = beta_p - mean * scale

    # Pass 2: recompute the cheap GEMM per tile and apply scale/shift; the
    # output is already (N, C, Ho*Wo) -> NCHW needs no transpose.
    out = pl.pallas_call(
        _norm_kernel,
        out_shape=jax.ShapeDtypeStruct((N, Cp8, HWp), jnp.float32),
        grid=(N, n_hw),
        in_specs=[patch_spec, wgt_spec,
                  pl.BlockSpec((Cp8, 1), lambda n, j: (0, 0)),
                  pl.BlockSpec((Cp8, 1), lambda n, j: (0, 0))],
        out_specs=pl.BlockSpec((None, Cp8, thw), lambda n, j: (n, 0, j)),
        compiler_params=params,
    )(pT_p, w_p, scale.reshape(Cp8, 1), shift.reshape(Cp8, 1))

    return out[:, :Cout, :HW].reshape(N, Cout, Ho, Wo)


# --------------------------------------------------------------------------
# Reference & test
# --------------------------------------------------------------------------
def _reference(x, weight, conv_bias, gamma, beta, *, stride, padding, dilation):
    y = lax.conv_general_dilated(
        x, weight,
        window_strides=(stride, stride),
        padding=((padding, padding), (padding, padding)),
        rhs_dilation=(dilation, dilation),
        dimension_numbers=("NCHW", "OIHW", "NCHW"),
    ) + conv_bias.reshape(1, -1, 1, 1)
    mean = jnp.mean(y, axis=(0, 2, 3), keepdims=True)
    var = jnp.mean((y - mean) ** 2, axis=(0, 2, 3), keepdims=True)
    yhat = (y - mean) * lax.rsqrt(var + EPS)
    return yhat * gamma.reshape(1, -1, 1, 1) + beta.reshape(1, -1, 1, 1)


if __name__ == "__main__":
    # Module config: conv2DBatchNorm(in_channels=4, out_channels=8,
    #                kernel_size=3, stride=1, padding=1, dilation=1, bias=True)
    N, Cin, H, W = 2, 4, 16, 16
    Cout, ksize, stride, padding, dilation = 8, 3, 1, 1, 1

    key = jax.random.PRNGKey(0)
    kx, kwgt, kb = jax.random.split(key, 3)

    x = jax.random.normal(kx, (N, Cin, H, W), jnp.float32)
    fan_in = Cin * ksize * ksize
    bound = 1.0 / (fan_in ** 0.5)
    weight = jax.random.uniform(kwgt, (Cout, Cin, ksize, ksize), jnp.float32,
                                -bound, bound)
    conv_bias = jax.random.uniform(kb, (Cout,), jnp.float32, -bound, bound)
    gamma = jnp.ones((Cout,), jnp.float32)    # BatchNorm2d default init
    beta = jnp.zeros((Cout,), jnp.float32)

    ref = _reference(x, weight, conv_bias, gamma, beta,
                     stride=stride, padding=padding, dilation=dilation)

    # tile_hw=256 covers a single spatial tile per image; tile_hw=None uses
    # the VMEM/megacore-aware auto tile (128 here -> a 2x2 pipelined grid).
    for thw in (256, None):
        run = functools.partial(conv2d_batchnorm, stride=stride,
                                padding=padding, dilation=dilation,
                                tile_hw=thw)
        out = jax.block_until_ready(jax.jit(run)(x, weight, conv_bias,
                                                 gamma, beta))
        assert out.shape == (N, Cout, H, W)
        # bf16 GEMM inputs (f32 accumulation) -> relaxed tolerance vs f32 ref.
        assert jnp.allclose(out, ref, atol=3e-2, rtol=3e-2), (
            "max abs err = %f" % float(jnp.max(jnp.abs(out - ref))))

    print("KERNEL_OK")
</pallas_src>

<mosaic_0001>
module attributes {stable_mosaic.version = 11 : i64} {
  func.func @_norm_kernel(%arg0: i32, %arg1: i32, %arg2: memref<1x40x256xbf16, #tpu.memory_space<vmem>>, %arg3: memref<8x40xbf16, #tpu.memory_space<vmem>>, %arg4: memref<8x1xf32, #tpu.memory_space<vmem>>, %arg5: memref<8x1xf32, #tpu.memory_space<vmem>>, %arg6: memref<1x8x256xf32, #tpu.memory_space<vmem>>) attributes {dimension_semantics = [#tpu.dimension_semantics<parallel>, #tpu.dimension_semantics<parallel>], iteration_bounds = array<i64: 2, 1>, scalar_prefetch = 0 : i64, scratch_operands = 0 : i64, tpu.core_type = #tpu.core_type<tc>, window_params = [{transform_indices = @transform_0, window_bounds = array<i64: 1, 40, 256>}, {pipeline_mode = #tpu.pipeline_mode<synchronous>, transform_indices = @transform_1, window_bounds = array<i64: 8, 40>}, {pipeline_mode = #tpu.pipeline_mode<synchronous>, transform_indices = @transform_2, window_bounds = array<i64: 8, 1>}, {pipeline_mode = #tpu.pipeline_mode<synchronous>, transform_indices = @transform_3, window_bounds = array<i64: 8, 1>}, {transform_indices = @transform_4, window_bounds = array<i64: 1, 8, 256>}]} {
    %c0 = arith.constant 0 : index
    %c0_0 = arith.constant 0 : index
    %0 = vector.load %arg3[%c0, %c0_0] : memref<8x40xbf16, #tpu.memory_space<vmem>>, vector<8x40xbf16>
    %c0_1 = arith.constant 0 : index
    %c0_2 = arith.constant 0 : index
    %c0_3 = arith.constant 0 : index
    %1 = vector.load %arg2[%c0_1, %c0_2, %c0_3] : memref<1x40x256xbf16, #tpu.memory_space<vmem>>, vector<1x40x256xbf16>
    %2 = vector.shape_cast %1 : vector<1x40x256xbf16> to vector<40x256xbf16>
    %cst = arith.constant dense<0.000000e+00> : vector<8x256xf32>
    %3 = tpu.matmul %0, %2, %cst {dimension_numbers = #tpu.dot_dimension_numbers<[1], [0], [0], [1], [0, 0, 1, 1], [], []>} : vector<8x40xbf16>, vector<40x256xbf16>, vector<8x256xf32> -> vector<8x256xf32>
    %c0_4 = arith.constant 0 : index
    %c0_5 = arith.constant 0 : index
    %4 = vector.load %arg4[%c0_4, %c0_5] : memref<8x1xf32, #tpu.memory_space<vmem>>, vector<8x1xf32>
    %5 = vector.broadcast %4 : vector<8x1xf32> to vector<8x256xf32>
    %6 = arith.mulf %3, %5 : vector<8x256xf32>
    %c0_6 = arith.constant 0 : index
    %c0_7 = arith.constant 0 : index
    %7 = vector.load %arg5[%c0_6, %c0_7] : memref<8x1xf32, #tpu.memory_space<vmem>>, vector<8x1xf32>
    %8 = vector.broadcast %7 : vector<8x1xf32> to vector<8x256xf32>
    %9 = arith.addf %6, %8 : vector<8x256xf32>
    %c0_8 = arith.constant 0 : index
    %c0_9 = arith.constant 0 : index
    %c0_10 = arith.constant 0 : index
    %10 = vector.load %arg6[%c0_8, %c0_9, %c0_10] : memref<1x8x256xf32, #tpu.memory_space<vmem>>, vector<1x8x256xf32>
    %11 = vector.shape_cast %10 : vector<1x8x256xf32> to vector<8x256xf32>
    %12 = vector.shape_cast %9 : vector<8x256xf32> to vector<1x8x256xf32>
    tpu.vector_store %arg6[%c0_8, %c0_9, %c0_10], %12 {strides = array<i32>} : memref<1x8x256xf32, #tpu.memory_space<vmem>>, vector<1x8x256xf32>,
    return
  }
  func.func @transform_0(%arg0: i32, %arg1: i32) -> (i32, i32, i32) {
    %c0_i32 = arith.constant 0 : i32
    %c0_i32_0 = arith.constant 0 : i32
    return %arg0, %c0_i32, %arg1 : i32, i32, i32
  }
  func.func @transform_1(%arg0: i32, %arg1: i32) -> (i32, i32) {
    %c0_i32 = arith.constant 0 : i32
    %c0_i32_0 = arith.constant 0 : i32
    %c0_i32_1 = arith.constant 0 : i32
    return %c0_i32, %c0_i32_0 : i32, i32
  }
  func.func @transform_2(%arg0: i32, %arg1: i32) -> (i32, i32) {
    %c0_i32 = arith.constant 0 : i32
    %c0_i32_0 = arith.constant 0 : i32
    %c0_i32_1 = arith.constant 0 : i32
    return %c0_i32, %c0_i32_0 : i32, i32
  }
  func.func @transform_3(%arg0: i32, %arg1: i32) -> (i32, i32) {
    %c0_i32 = arith.constant 0 : i32
    %c0_i32_0 = arith.constant 0 : i32
    %c0_i32_1 = arith.constant 0 : i32
    return %c0_i32, %c0_i32_0 : i32, i32
  }
  func.func @transform_4(%arg0: i32, %arg1: i32) -> (i32, i32, i32) {
    %c0_i32 = arith.constant 0 : i32
    %c0_i32_0 = arith.constant 0 : i32
    return %arg0, %c0_i32, %arg1 : i32, i32, i32
  }
}

module attributes {stable_mosaic.version = 11 : i64} {
  func.func @_stats_kernel(%arg0: i32, %arg1: i32, %arg2: memref<1x40x256xbf16, #tpu.memory_space<vmem>>, %arg3: memref<8x40xbf16, #tpu.memory_space<vmem>>, %arg4: memref<1x1x8x2xf32, #tpu.memory_space<vmem>>) attributes {dimension_semantics = [#tpu.dimension_semantics<parallel>, #tpu.dimension_semantics<parallel>], iteration_bounds = array<i64: 2, 1>, scalar_prefetch = 0 : i64, scratch_operands = 0 : i64, tpu.core_type = #tpu.core_type<tc>, window_params = [{transform_indices = @transform_0, window_bounds = array<i64: 1, 40, 256>}, {pipeline_mode = #tpu.pipeline_mode<synchronous>, transform_indices = @transform_1, window_bounds = array<i64: 8, 40>}, {transform_indices = @transform_2, window_bounds = array<i64: 1, 1, 8, 2>}]} {
    %c0 = arith.constant 0 : index
    %c0_0 = arith.constant 0 : index
    %0 = vector.load %arg3[%c0, %c0_0] : memref<8x40xbf16, #tpu.memory_space<vmem>>, vector<8x40xbf16>
    %c0_1 = arith.constant 0 : index
    %c0_2 = arith.constant 0 : index
    %c0_3 = arith.constant 0 : index
    %1 = vector.load %arg2[%c0_1, %c0_2, %c0_3] : memref<1x40x256xbf16, #tpu.memory_space<vmem>>, vector<1x40x256xbf16>
    %2 = vector.shape_cast %1 : vector<1x40x256xbf16> to vector<40x256xbf16>
    %cst = arith.constant dense<0.000000e+00> : vector<8x256xf32>
    %3 = tpu.matmul %0, %2, %cst {dimension_numbers = #tpu.dot_dimension_numbers<[1], [0], [0], [1], [0, 0, 1, 1], [], []>} : vector<8x40xbf16>, vector<40x256xbf16>, vector<8x256xf32> -> vector<8x256xf32>
    %cst_4 = arith.constant dense<0.000000e+00> : vector<8xf32>
    %4 = vector.multi_reduction <add>, %3, %cst_4 [1] : vector<8x256xf32> to vector<8xf32>
    %5 = vector.shape_cast %4 : vector<8xf32> to vector<8x1xf32>
    %c0_5 = arith.constant 0 : index
    %c0_6 = arith.constant 0 : index
    %c0_7 = arith.constant 0 : index
    %c0_8 = arith.constant 0 : index
    %6 = vector.load %arg4[%c0_5, %c0_6, %c0_7, %c0_8] : memref<1x1x8x2xf32, #tpu.memory_space<vmem>>, vector<1x1x8x1xf32>
    %7 = vector.shape_cast %6 : vector<1x1x8x1xf32> to vector<8x1xf32>
    %8 = vector.shape_cast %5 : vector<8x1xf32> to vector<1x1x8x1xf32>
    tpu.vector_store %arg4[%c0_5, %c0_6, %c0_7, %c0_8], %8 {strides = array<i32>} : memref<1x1x8x2xf32, #tpu.memory_space<vmem>>, vector<1x1x8x1xf32>,
    %9 = arith.mulf %3, %3 : vector<8x256xf32>
    %cst_9 = arith.constant dense<0.000000e+00> : vector<8xf32>
    %10 = vector.multi_reduction <add>, %9, %cst_9 [1] : vector<8x256xf32> to vector<8xf32>
    %11 = vector.shape_cast %10 : vector<8xf32> to vector<8x1xf32>
    %c0_10 = arith.constant 0 : index
    %c0_11 = arith.constant 0 : index
    %c0_12 = arith.constant 0 : index
    %c1 = arith.constant 1 : index
    %12 = vector.load %arg4[%c0_10, %c0_11, %c0_12, %c1] : memref<1x1x8x2xf32, #tpu.memory_space<vmem>>, vector<1x1x8x1xf32>
    %13 = vector.shape_cast %12 : vector<1x1x8x1xf32> to vector<8x1xf32>
    %14 = vector.shape_cast %11 : vector<8x1xf32> to vector<1x1x8x1xf32>
    tpu.vector_store %arg4[%c0_10, %c0_11, %c0_12, %c1], %14 {strides = array<i32>} : memref<1x1x8x2xf32, #tpu.memory_space<vmem>>, vector<1x1x8x1xf32>,
    return
  }
  func.func @transform_0(%arg0: i32, %arg1: i32) -> (i32, i32, i32) {
    %c0_i32 = arith.constant 0 : i32
    %c0_i32_0 = arith.constant 0 : i32
    return %arg0, %c0_i32, %arg1 : i32, i32, i32
  }
  func.func @transform_1(%arg0: i32, %arg1: i32) -> (i32, i32) {
    %c0_i32 = arith.constant 0 : i32
    %c0_i32_0 = arith.constant 0 : i32
    %c0_i32_1 = arith.constant 0 : i32
    return %c0_i32, %c0_i32_0 : i32, i32
  }
  func.func @transform_2(%arg0: i32, %arg1: i32) -> (i32, i32, i32, i32) {
    %c0_i32 = arith.constant 0 : i32
    %c0_i32_0 = arith.constant 0 : i32
    %c0_i32_1 = arith.constant 0 : i32
    return %arg0, %arg1, %c0_i32, %c0_i32_0 : i32, i32, i32, i32
  }
}

</mosaic_0001>

<llo_original>
// kernel: conv2d_batchnorm.2
$region0: #{conv2d_batchnorm.2}
  #allocation0 [shape = 'u32[]', space=smem, size = 0x4, offset = 0x4, fixed_abs, tag = 'smem constant byte address 0x4 - core index']
  #allocation1 [shape = 'u32[144,128]{1,0:T(1,128)}', space=vmem, size = 0x12000, scoped, tag = 'internal scratch']
  %s0 = inlined_call_operand.vmem [shape: bf16[2,40,256], index: 0, kind: input, shape index: {}]
  %s1 = inlined_call_operand.vmem [shape: bf16[8,40], index: 1, kind: input, shape index: {}]
  %s2 = inlined_call_operand.vmem [shape: f32[2,1,8,2], index: 2, kind: output, shape index: {}]
  %s3 = sld [smem:[#allocation0]]
  $region41: #{conv2d_batchnorm.2} parent=0
    _
  %s5 = ssub.s32 1, %s3
  %s6 = scalar_select 0, %s5, %s3
  loop: start=0, step=1, limit=4
  $region2: #{conv2d_batchnorm.2} parent=0 // loop_pre_header
    _
  $region3: #{conv2d_batchnorm.2} parent=0 // loop_header
    %s8 = sphi 0, %s12
    %p9 = scmp.ge.s32.totalorder %s8, 4
    %s15 = sphi 0, %s27
    %s16 = sphi 0, %s23
    %s17 = sphi 0, %s15
    %s18 = sphi 0, %s16
    %s19 = sphi 0, %s17
    %s20 = sphi 0, %s18
    %s32 = sphi 0, %s34
    %s35 = sphi 0, %s32
    %s36 = sphi 0, %s35
    %s52 = sphi 0, %s36
    %s56 = sphi 0, %s56
    %s58 = sphi 0, %s56
    %s59 = sphi 0, %s58
    %s73 = sphi 0, %s59
    %s81 = sphi 0, %s83
    %s84 = sphi 0, %s81
    %s85 = sphi 0, %s84
    %s101 = sphi 0, %s85
  $region4: #{conv2d_batchnorm.2} parent=0 // loop_header_branch
    %11 = sbr.rel (%p9) target = $region8
  $region5: #{conv2d_batchnorm.2} parent=0 // loop_body
    %s13 = ssub.s32 %s8, 1
    %s14 = ssub.s32 %s8, 2
    %s21 = sadd.s32 1, %s16
    %p22 = scmp.ge.s32.totalorder %s21, 1
    %s23 = scalar_select %p22, 0, %s21
    %s24 = sadd.s32 1, %s15
    %s25 = scalar_select %p22, %s24, %s15
    %p26 = scmp.ge.s32.totalorder %s25, 2
    %s27 = scalar_select %p26, 0, %s25
    %s28 = ssub.s32 %s15, %s27
    %s29 = ssub.s32 %s16, %s23
    %s30 = sor.u32 %s28, %s29
    %p31 = scmp.eq.s32.totalorder %s30, 0
    %s33 = sadd.s32 %s32, 1
    %s34 = scalar_select %p31, %s32, %s33
    %p37 = pneg %p31
    %p38 = scmp.eq.s32.totalorder %s8, 1
    %p39 = por %p37, %p38
    %p40 = scmp.ne.s32.totalorder %s32, %s35
    %p41 = scmp.eq.s32.totalorder %s8, 0
    %p42 = por %p40, %p41
    %p43 = scmp.ne.s32.totalorder %s32, %s35
    %p44 = scmp.eq.s32.totalorder %s13, 1
    %p45 = por %p43, %p44
    %p46 = scmp.ne.s32.totalorder %s35, %s36
    %p47 = scmp.eq.s32.totalorder %s13, 0
    %p48 = por %p46, %p47
    %p49 = scmp.ne.s32.totalorder %s35, %s36
    %p50 = scmp.eq.s32.totalorder %s14, 1
    %p51 = por %p49, %p50
    %p53 = scmp.ne.s32.totalorder %s36, %s52
    %p54 = scmp.eq.s32.totalorder %s14, 0
    %p55 = por %p53, %p54
    %s57 = sadd.s32 %s56, 1
    %p60 = scmp.eq.s32.totalorder %s8, 1
    %p61 = scmp.ne.s32.totalorder %s56, %s58
    %p62 = scmp.eq.s32.totalorder %s8, 0
    %p63 = por %p61, %p62
    %p64 = scmp.ne.s32.totalorder %s56, %s58
    %p65 = scmp.eq.s32.totalorder %s13, 1
    %p66 = por %p64, %p65
    %p67 = scmp.ne.s32.totalorder %s58, %s59
    %p68 = scmp.eq.s32.totalorder %s13, 0
    %p69 = por %p67, %p68
    %p70 = scmp.ne.s32.totalorder %s58, %s59
    %p71 = scmp.eq.s32.totalorder %s14, 1
    %p72 = por %p70, %p71
    %p74 = scmp.ne.s32.totalorder %s59, %s73
    %p75 = scmp.eq.s32.totalorder %s14, 0
    %p76 = por %p74, %p75
    %s77 = ssub.s32 %s15, %s27
    %s78 = ssub.s32 %s16, %s23
    %s79 = sor.u32 %s77, %s78
    %p80 = scmp.eq.s32.totalorder %s79, 0
    %s82 = sadd.s32 %s81, 1
    %s83 = scalar_select %p80, %s81, %s82
    %p86 = pneg %p80
    %p87 = scmp.eq.s32.totalorder %s8, 1
    %p88 = por %p86, %p87
    %p89 = scmp.ne.s32.totalorder %s81, %s84
    %p90 = scmp.eq.s32.totalorder %s8, 0
    %p91 = por %p89, %p90
    %p92 = scmp.ne.s32.totalorder %s81, %s84
    %p93 = scmp.eq.s32.totalorder %s13, 1
    %p94 = por %p92, %p93
    %p95 = scmp.ne.s32.totalorder %s84, %s85
    %p96 = scmp.eq.s32.totalorder %s13, 0
    %p97 = por %p95, %p96
    %p98 = scmp.ne.s32.totalorder %s84, %s85
    %p99 = scmp.eq.s32.totalorder %s14, 1
    %p100 = por %p98, %p99
    %p102 = scmp.ne.s32.totalorder %s85, %s101
    %p103 = scmp.eq.s32.totalorder %s14, 0
    %p104 = por %p102, %p103
    %p105 = scmp.le.s32.totalorder 1, %s8
    %p106 = scmp.lt.s32.totalorder %s8, 3
    %p107 = pnand %p105, %p106
    %p108 = pneg %p107
    // Predicated region
    $region9: #{conv2d_batchnorm.2} parent=5 // pred_check
      _
    $region10: #{conv2d_batchnorm.2} parent=5 // pred_check_branch
      %110 = sbr.rel (%p107) target = $region12
    $region11: #{conv2d_batchnorm.2} parent=5 // pred_region
      %s111 = ssub.s32 %s8, 1
      // Predicated region
      $region13: #{conv2d_batchnorm.2} parent=11 // pred_check
        %p112 = pneg %p69
      $region14: #{conv2d_batchnorm.2} parent=11 // pred_check_branch
        %114 = sbr.rel (%p112) target = $region16
      $region15: #{conv2d_batchnorm.2} parent=11 // pred_region
        _
      $region16: #{conv2d_batchnorm.2} parent=11 // pred_fallthru
        _
    $region12: #{conv2d_batchnorm.2} parent=5 // pred_fallthru
      _
    %p115 = scmp.lt.s32.totalorder %s8, 2
    // Predicated region
    $region17: #{conv2d_batchnorm.2} parent=5 // pred_check
      %p116 = pneg %p115
    $region18: #{conv2d_batchnorm.2} parent=5 // pred_check_branch
      %118 = sbr.rel (%p116) target = $region20
    $region19: #{conv2d_batchnorm.2} parent=5 // pred_region
      // Predicated region
      $region21: #{conv2d_batchnorm.2} parent=19 // pred_check
        %p119 = pneg %p42
      $region22: #{conv2d_batchnorm.2} parent=19 // pred_check_branch
        %121 = sbr.rel (%p119) target = $region24
      $region23: #{conv2d_batchnorm.2} parent=19 // pred_region
        %s122 = smul.u32 2, %s16
        %p123 = scmp.lt.s32.totalorder %s15, 1
        %s124 = scalar_select %p123, %s15, 1
        %p125 = scmp.lt.s32.totalorder %s122, 1
        %s126 = scalar_select %p125, %s122, 1
        %s127 = smul.addr %s124, 10
        %s128 = sadd.s32 %s126, %s127
        %s129 = smul.addr %s128, 4
        %s130 = scalar_lea.vmem %s0, %s129
        %s131 = smul.u32 2, %s16
      $region24: #{conv2d_batchnorm.2} parent=19 // pred_fallthru
        _
    $region20: #{conv2d_batchnorm.2} parent=5 // pred_fallthru
      _
    %p132 = scmp.le.s32.totalorder 1, %s8
    %p133 = scmp.lt.s32.totalorder %s8, 3
    %p134 = pnand %p132, %p133
    %p135 = pneg %p134
    // Predicated region
    $region25: #{conv2d_batchnorm.2} parent=5 // pred_check
      _
    $region26: #{conv2d_batchnorm.2} parent=5 // pred_check_branch
      %137 = sbr.rel (%p134) target = $region28
    $region27: #{conv2d_batchnorm.2} parent=5 // pred_region
      %s138 = ssub.s32 %s8, 1
      %s139 = smul.u32 2, %s18
      %p140 = scmp.lt.s32.totalorder %s17, 1
      %s141 = scalar_select %p140, %s17, 1
      %p142 = scmp.lt.s32.totalorder %s139, 1
      %s143 = scalar_select %p142, %s139, 1
      %s144 = smul.addr %s141, 10
      %s145 = sadd.s32 %s143, %s144
      %s146 = smul.addr %s145, 4
      %s147 = scalar_lea.vmem %s0, %s146
      %p148 = pneg %p48
      %p149 = pneg %p45
      %p150 = pneg %p69
      %p151 = pneg %p66
      %p152 = pneg %p97
      %p153 = pneg %p94
      %p154 = scmp.lt.s32.totalorder %s17, 1
      %s155 = scalar_select %p154, %s17, 1
      %p156 = scmp.lt.s32.totalorder %s18, 0
      %s157 = scalar_select %p156, %s18, 0
      %s158 = sadd.s32 %s157, %s155
      %s159 = smul.addr %s158, 8
      %s160 = scalar_lea.vmem %s2, %s159
      %s161 = smul.u32 2, %s18
      %p162 = scmp.lt.s32.totalorder %s17, 1
      %s163 = scalar_select %p162, %s17, 1
      %p164 = scmp.lt.s32.totalorder %s161, 1
      %s165 = scalar_select %p164, %s161, 1
      %s166 = smul.addr %s163, 10
      %s167 = sadd.s32 %s165, %s166
      %s168 = smul.addr %s167, 4
      %s169 = scalar_lea.vmem %s0, %s168
      %s170 = smul.u32 2, %s18
      %p171 = scmp.lt.s32.totalorder %s17, 1
      %s172 = scalar_select %p171, %s17, 1
      %p173 = scmp.lt.s32.totalorder %s18, 0
      %s174 = scalar_select %p173, %s18, 0
      %s175 = sadd.s32 %s174, %s172
      %s176 = smul.addr %s175, 8
      %s177 = scalar_lea.vmem %s2, %s176
      %v179 = vld [vmem:[%s1] sm:$0xf]
      %v180 = vld [vmem:[%s169] sm:$0xff]
      %v181 = vld [vmem:[%s169 + $0x8] sm:$0xff]
      %v182 = vld [vmem:[%s169 + $0x10] sm:$0xff]
      %v183 = vld [vmem:[%s169 + $0x18] sm:$0xff]
      %v184 = vld [vmem:[%s169 + $0x20] sm:$0xff]
      %v190 = vunpack.c.l.b16 %v180
      %v191 = vunpack.c.h.b16 %v180
      %v192 = vunpack.c.l.b16 %v181
      %v193 = vunpack.c.h.b16 %v181
      %v194 = vunpack.c.l.b16 %v182
      %v195 = vunpack.c.h.b16 %v182
      %v196 = vunpack.c.l.b16 %v183
      %v197 = vunpack.c.h.b16 %v183
      %v198 = vunpack.c.l.b16 %v184
      %v199 = vunpack.c.h.b16 %v184
      %v200 = vpack.c.b16 %v192, %v190
      %v201 = vpack.c.b16 %v193, %v191
      %v202 = vpack.c.b16 %v196, %v194
      %v203 = vpack.c.b16 %v197, %v195
      %v204 = vpack.c.b16 %v198, %v198
      %v205 = vpack.c.b16 %v199, %v199
      %vm210 = vcmask 326656
      %v212 = vsel %vm210, %v179, 0
      %vm214 = vcmask 1043456
      %v216 = vsel %vm214, %v204, 0
      %v219 = vsel %vm214, %v205, 0
      %221 = vmatprep.subr.bf16.mxu0 0
      %222 = vmatpush1.bf16.msra.mxu0 0
      %223 = vmatprep.subr.bf16.mxu0 0
      %224 = vmatpush1.bf16.msra.mxu0 0
      %225 = vmatprep.subr.bf16.mxu0 0
      %226 = vmatpush1.bf16.msra.mxu0 0
      %227 = vmatprep.subr.bf16.mxu0 0
      %228 = vmatpush1.bf16.msra.mxu0 0
      %229 = vmatprep.subr.bf16.mxu0 0
      %230 = vmatpush1.bf16.msra.mxu0 0
      %231 = vmatprep.subr.bf16.mxu0 %v219
      %232 = vmatpush1.bf16.msra.mxu0 %v216
      %233 = vmatprep.subr.bf16.mxu0 %v203
      %234 = vmatpush1.bf16.msra.mxu0 %v202
      %235 = vmatprep.subr.bf16.mxu0 %v201
      %236 = vmatpush1.bf16.msra.mxu0 %v200
      %237 = vmatprep.subr.bf16.mxu0 0
      %238 = vmatpush2.bf16.msra.mxu0 0
      %239 = vmatprep.subr.bf16.mxu0 0
      %240 = vmatpush2.bf16.msra.mxu0 0
      %241 = vmatprep.subr.bf16.mxu0 0
      %242 = vmatpush2.bf16.msra.mxu0 0
      %243 = vmatprep.subr.bf16.mxu0 0
      %244 = vmatpush2.bf16.msra.mxu0 0
      %245 = vmatprep.subr.bf16.mxu0 0
      %246 = vmatpush2.bf16.msra.mxu0 0
      %247 = vmatprep.subr.bf16.mxu0 0
      %248 = vmatpush2.bf16.msra.mxu0 0
      %249 = vmatprep.subr.bf16.mxu0 0
      %250 = vmatpush2.bf16.msra.mxu0 0
      %251 = vmatprep.subr.bf16.mxu0 0
      %252 = vmatpush2.bf16.msra.mxu0 0
      %253 = vmatprep.mubr.bf16.mxu0 0
      %254 = vmatmul.mubr.bf16.gmra.mxu0 %v212
      %v255 = vpop.f32.mrf.mxu0
      %v256 = vadd.f32 0.0, %v255
      %v257 = vpop.f32.mrf.mxu0
      %v258 = vadd.f32 0.0, %v257
      %v259 = vpop.f32.mrf.mxu0
      %v260 = vpop.f32.mrf.mxu0
      %261 = vdwg.mxu0
      %v262 = vadd.f32 %v256, %v258
      %263 = vadd.xlane.f32.xlu0 %v262
      %v264 = vpop.xlane.xlu0 %263
      %vm265 = vcmask 7168
      %266 = vst.msk [vmem:[%s177] sm:$0xff] %vm265, %v264
      %v267 = vmul.f32 %v256, %v256
      %v268 = vmul.f32 %v258, %v258
      %v269 = vadd.f32 %v267, %v268
      %270 = vadd.xlane.f32.xlu0 %v269
      %v271 = vpop.xlane.xlu0 %270
      %vm272 = vcmask 15368
      %273 = vst.msk [vmem:[%s177] sm:$0xff] %vm272, %v271
      %p274 = scmp.lt.s32.totalorder %s17, 1
      %s275 = scalar_select %p274, %s17, 1
      %p276 = scmp.lt.s32.totalorder %s18, 0
      %s277 = scalar_select %p276, %s18, 0
      %s278 = sadd.s32 %s277, %s275
      %s279 = smul.addr %s278, 8
      %s280 = scalar_lea.vmem %s2, %s279
      // Predicated region
      $region29: #{conv2d_batchnorm.2} parent=27 // pred_check
        %p281 = pneg %p94
      $region30: #{conv2d_batchnorm.2} parent=27 // pred_check_branch
        %283 = sbr.rel (%p281) target = $region32
      $region31: #{conv2d_batchnorm.2} parent=27 // pred_region
        _
      $region32: #{conv2d_batchnorm.2} parent=27 // pred_fallthru
        _
    $region28: #{conv2d_batchnorm.2} parent=5 // pred_fallthru
      _
    %p284 = scmp.le.s32.totalorder 2, %s8
    // Predicated region
    $region33: #{conv2d_batchnorm.2} parent=5 // pred_check
      %p285 = pneg %p284
    $region34: #{conv2d_batchnorm.2} parent=5 // pred_check_branch
      %287 = sbr.rel (%p285) target = $region36
    $region35: #{conv2d_batchnorm.2} parent=5 // pred_region
      %s288 = ssub.s32 %s8, 2
      // Predicated region
      $region37: #{conv2d_batchnorm.2} parent=35 // pred_check
        %p289 = pneg %p100
      $region38: #{conv2d_batchnorm.2} parent=35 // pred_check_branch
        %291 = sbr.rel (%p289) target = $region40
      $region39: #{conv2d_batchnorm.2} parent=35 // pred_region
        %p292 = scmp.lt.s32.totalorder %s19, 1
        %s293 = scalar_select %p292, %s19, 1
        %p294 = scmp.lt.s32.totalorder %s20, 0
        %s295 = scalar_select %p294, %s20, 0
        %s296 = sadd.s32 %s295, %s293
        %s297 = smul.addr %s296, 8
        %s298 = scalar_lea.vmem %s2, %s297
      $region40: #{conv2d_batchnorm.2} parent=35 // pred_fallthru
        _
    $region36: #{conv2d_batchnorm.2} parent=5 // pred_fallthru
      _
  $region6: #{conv2d_batchnorm.2} parent=0 // loop_footer
    %s12 = sadd.s32 1, %s8
  $region7: #{conv2d_batchnorm.2} parent=0 // loop_footer_branch
    %7 = sbr.rel target = $region3
  $region8: #{conv2d_batchnorm.2} parent=0 // loop_exit
    _

// kernel: conv2d_batchnorm.3
$region0: #{conv2d_batchnorm.3}
  #allocation0 [shape = 'u32[]', space=smem, size = 0x4, offset = 0x4, fixed_abs, tag = 'smem constant byte address 0x4 - core index']
  #allocation1 [shape = 'u32[144,128]{1,0:T(1,128)}', space=vmem, size = 0x12000, scoped, tag = 'internal scratch']
  %s0 = inlined_call_operand.vmem [shape: bf16[2,40,256], index: 0, kind: input, shape index: {}]
  %s1 = inlined_call_operand.vmem [shape: bf16[8,40], index: 1, kind: input, shape index: {}]
  %s2 = inlined_call_operand.vmem [shape: f32[8,1], index: 2, kind: input, shape index: {}]
  %s3 = inlined_call_operand.vmem [shape: f32[8,1], index: 3, kind: input, shape index: {}]
  %s4 = inlined_call_operand.vmem [shape: f32[2,8,256], index: 4, kind: output, shape index: {}]
  %s5 = sld [smem:[#allocation0]]
  $region49: #{conv2d_batchnorm.3} parent=0
    _
  %s7 = ssub.s32 1, %s5
  %s8 = scalar_select 0, %s7, %s5
  loop: start=0, step=1, limit=4
  $region2: #{conv2d_batchnorm.3} parent=0 // loop_pre_header
    _
  $region3: #{conv2d_batchnorm.3} parent=0 // loop_header
    %s10 = sphi 0, %s14
    %p11 = scmp.ge.s32.totalorder %s10, 4
    %s17 = sphi 0, %s29
    %s18 = sphi 0, %s25
    %s19 = sphi 0, %s17
    %s20 = sphi 0, %s18
    %s21 = sphi 0, %s19
    %s22 = sphi 0, %s20
    %s34 = sphi 0, %s36
    %s37 = sphi 0, %s34
    %s38 = sphi 0, %s37
    %s54 = sphi 0, %s38
    %s58 = sphi 0, %s58
    %s60 = sphi 0, %s58
    %s61 = sphi 0, %s60
    %s75 = sphi 0, %s61
    %s79 = sphi 0, %s79
    %s81 = sphi 0, %s79
    %s82 = sphi 0, %s81
    %s96 = sphi 0, %s82
    %s100 = sphi 0, %s100
    %s102 = sphi 0, %s100
    %s103 = sphi 0, %s102
    %s117 = sphi 0, %s103
    %s125 = sphi 0, %s127
    %s128 = sphi 0, %s125
    %s129 = sphi 0, %s128
    %s145 = sphi 0, %s129
  $region4: #{conv2d_batchnorm.3} parent=0 // loop_header_branch
    %13 = sbr.rel (%p11) target = $region8
  $region5: #{conv2d_batchnorm.3} parent=0 // loop_body
    %s15 = ssub.s32 %s10, 1
    %s16 = ssub.s32 %s10, 2
    %s23 = sadd.s32 1, %s18
    %p24 = scmp.ge.s32.totalorder %s23, 1
    %s25 = scalar_select %p24, 0, %s23
    %s26 = sadd.s32 1, %s17
    %s27 = scalar_select %p24, %s26, %s17
    %p28 = scmp.ge.s32.totalorder %s27, 2
    %s29 = scalar_select %p28, 0, %s27
    %s30 = ssub.s32 %s17, %s29
    %s31 = ssub.s32 %s18, %s25
    %s32 = sor.u32 %s30, %s31
    %p33 = scmp.eq.s32.totalorder %s32, 0
    %s35 = sadd.s32 %s34, 1
    %s36 = scalar_select %p33, %s34, %s35
    %p39 = pneg %p33
    %p40 = scmp.eq.s32.totalorder %s10, 1
    %p41 = por %p39, %p40
    %p42 = scmp.ne.s32.totalorder %s34, %s37
    %p43 = scmp.eq.s32.totalorder %s10, 0
    %p44 = por %p42, %p43
    %p45 = scmp.ne.s32.totalorder %s34, %s37
    %p46 = scmp.eq.s32.totalorder %s15, 1
    %p47 = por %p45, %p46
    %p48 = scmp.ne.s32.totalorder %s37, %s38
    %p49 = scmp.eq.s32.totalorder %s15, 0
    %p50 = por %p48, %p49
    %p51 = scmp.ne.s32.totalorder %s37, %s38
    %p52 = scmp.eq.s32.totalorder %s16, 1
    %p53 = por %p51, %p52
    %p55 = scmp.ne.s32.totalorder %s38, %s54
    %p56 = scmp.eq.s32.totalorder %s16, 0
    %p57 = por %p55, %p56
    %s59 = sadd.s32 %s58, 1
    %p62 = scmp.eq.s32.totalorder %s10, 1
    %p63 = scmp.ne.s32.totalorder %s58, %s60
    %p64 = scmp.eq.s32.totalorder %s10, 0
    %p65 = por %p63, %p64
    %p66 = scmp.ne.s32.totalorder %s58, %s60
    %p67 = scmp.eq.s32.totalorder %s15, 1
    %p68 = por %p66, %p67
    %p69 = scmp.ne.s32.totalorder %s60, %s61
    %p70 = scmp.eq.s32.totalorder %s15, 0
    %p71 = por %p69, %p70
    %p72 = scmp.ne.s32.totalorder %s60, %s61
    %p73 = scmp.eq.s32.totalorder %s16, 1
    %p74 = por %p72, %p73
    %p76 = scmp.ne.s32.totalorder %s61, %s75
    %p77 = scmp.eq.s32.totalorder %s16, 0
    %p78 = por %p76, %p77
    %s80 = sadd.s32 %s79, 1
    %p83 = scmp.eq.s32.totalorder %s10, 1
    %p84 = scmp.ne.s32.totalorder %s79, %s81
    %p85 = scmp.eq.s32.totalorder %s10, 0
    %p86 = por %p84, %p85
    %p87 = scmp.ne.s32.totalorder %s79, %s81
    %p88 = scmp.eq.s32.totalorder %s15, 1
    %p89 = por %p87, %p88
    %p90 = scmp.ne.s32.totalorder %s81, %s82
    %p91 = scmp.eq.s32.totalorder %s15, 0
    %p92 = por %p90, %p91
    %p93 = scmp.ne.s32.totalorder %s81, %s82
    %p94 = scmp.eq.s32.totalorder %s16, 1
    %p95 = por %p93, %p94
    %p97 = scmp.ne.s32.totalorder %s82, %s96
    %p98 = scmp.eq.s32.totalorder %s16, 0
    %p99 = por %p97, %p98
    %s101 = sadd.s32 %s100, 1
    %p104 = scmp.eq.s32.totalorder %s10, 1
    %p105 = scmp.ne.s32.totalorder %s100, %s102
    %p106 = scmp.eq.s32.totalorder %s10, 0
    %p107 = por %p105, %p106
    %p108 = scmp.ne.s32.totalorder %s100, %s102
    %p109 = scmp.eq.s32.totalorder %s15, 1
    %p110 = por %p108, %p109
    %p111 = scmp.ne.s32.totalorder %s102, %s103
    %p112 = scmp.eq.s32.totalorder %s15, 0
    %p113 = por %p111, %p112
    %p114 = scmp.ne.s32.totalorder %s102, %s103
    %p115 = scmp.eq.s32.totalorder %s16, 1
    %p116 = por %p114, %p115
    %p118 = scmp.ne.s32.totalorder %s103, %s117
    %p119 = scmp.eq.s32.totalorder %s16, 0
    %p120 = por %p118, %p119
    %s121 = ssub.s32 %s17, %s29
    %s122 = ssub.s32 %s18, %s25
    %s123 = sor.u32 %s121, %s122
    %p124 = scmp.eq.s32.totalorder %s123, 0
    %s126 = sadd.s32 %s125, 1
    %s127 = scalar_select %p124, %s125, %s126
    %p130 = pneg %p124
    %p131 = scmp.eq.s32.totalorder %s10, 1
    %p132 = por %p130, %p131
    %p133 = scmp.ne.s32.totalorder %s125, %s128
    %p134 = scmp.eq.s32.totalorder %s10, 0
    %p135 = por %p133, %p134
    %p136 = scmp.ne.s32.totalorder %s125, %s128
    %p137 = scmp.eq.s32.totalorder %s15, 1
    %p138 = por %p136, %p137
    %p139 = scmp.ne.s32.totalorder %s128, %s129
    %p140 = scmp.eq.s32.totalorder %s15, 0
    %p141 = por %p139, %p140
    %p142 = scmp.ne.s32.totalorder %s128, %s129
    %p143 = scmp.eq.s32.totalorder %s16, 1
    %p144 = por %p142, %p143
    %p146 = scmp.ne.s32.totalorder %s129, %s145
    %p147 = scmp.eq.s32.totalorder %s16, 0
    %p148 = por %p146, %p147
    %p149 = scmp.le.s32.totalorder 1, %s10
    %p150 = scmp.lt.s32.totalorder %s10, 3
    %p151 = pnand %p149, %p150
    %p152 = pneg %p151
    // Predicated region
    $region9: #{conv2d_batchnorm.3} parent=5 // pred_check
      _
    $region10: #{conv2d_batchnorm.3} parent=5 // pred_check_branch
      %154 = sbr.rel (%p151) target = $region12
    $region11: #{conv2d_batchnorm.3} parent=5 // pred_region
      %s155 = ssub.s32 %s10, 1
      // Predicated region
      $region13: #{conv2d_batchnorm.3} parent=11 // pred_check
        %p156 = pneg %p71
      $region14: #{conv2d_batchnorm.3} parent=11 // pred_check_branch
        %158 = sbr.rel (%p156) target = $region16
      $region15: #{conv2d_batchnorm.3} parent=11 // pred_region
        _
      $region16: #{conv2d_batchnorm.3} parent=11 // pred_fallthru
        _
      // Predicated region
      $region17: #{conv2d_batchnorm.3} parent=11 // pred_check
        %p159 = pneg %p92
      $region18: #{conv2d_batchnorm.3} parent=11 // pred_check_branch
        %161 = sbr.rel (%p159) target = $region20
      $region19: #{conv2d_batchnorm.3} parent=11 // pred_region
        _
      $region20: #{conv2d_batchnorm.3} parent=11 // pred_fallthru
        _
      // Predicated region
      $region21: #{conv2d_batchnorm.3} parent=11 // pred_check
        %p162 = pneg %p113
      $region22: #{conv2d_batchnorm.3} parent=11 // pred_check_branch
        %164 = sbr.rel (%p162) target = $region24
      $region23: #{conv2d_batchnorm.3} parent=11 // pred_region
        _
      $region24: #{conv2d_batchnorm.3} parent=11 // pred_fallthru
        _
    $region12: #{conv2d_batchnorm.3} parent=5 // pred_fallthru
      _
    %p165 = scmp.lt.s32.totalorder %s10, 2
    // Predicated region
    $region25: #{conv2d_batchnorm.3} parent=5 // pred_check
      %p166 = pneg %p165
    $region26: #{conv2d_batchnorm.3} parent=5 // pred_check_branch
      %168 = sbr.rel (%p166) target = $region28
    $region27: #{conv2d_batchnorm.3} parent=5 // pred_region
      // Predicated region
      $region29: #{conv2d_batchnorm.3} parent=27 // pred_check
        %p169 = pneg %p44
      $region30: #{conv2d_batchnorm.3} parent=27 // pred_check_branch
        %171 = sbr.rel (%p169) target = $region32
      $region31: #{conv2d_batchnorm.3} parent=27 // pred_region
        %s172 = smul.u32 2, %s18
        %p173 = scmp.lt.s32.totalorder %s17, 1
        %s174 = scalar_select %p173, %s17, 1
        %p175 = scmp.lt.s32.totalorder %s172, 1
        %s176 = scalar_select %p175, %s172, 1
        %s177 = smul.addr %s174, 10
        %s178 = sadd.s32 %s176, %s177
        %s179 = smul.addr %s178, 4
        %s180 = scalar_lea.vmem %s0, %s179
        %s181 = smul.u32 2, %s18
      $region32: #{conv2d_batchnorm.3} parent=27 // pred_fallthru
        _
    $region28: #{conv2d_batchnorm.3} parent=5 // pred_fallthru
      _
    %p182 = scmp.le.s32.totalorder 1, %s10
    %p183 = scmp.lt.s32.totalorder %s10, 3
    %p184 = pnand %p182, %p183
    %p185 = pneg %p184
    // Predicated region
    $region33: #{conv2d_batchnorm.3} parent=5 // pred_check
      _
    $region34: #{conv2d_batchnorm.3} parent=5 // pred_check_branch
      %187 = sbr.rel (%p184) target = $region36
    $region35: #{conv2d_batchnorm.3} parent=5 // pred_region
      %s188 = ssub.s32 %s10, 1
      %s189 = smul.u32 2, %s20
      %p190 = scmp.lt.s32.totalorder %s19, 1
      %s191 = scalar_select %p190, %s19, 1
      %p192 = scmp.lt.s32.totalorder %s189, 1
      %s193 = scalar_select %p192, %s189, 1
      %s194 = smul.addr %s191, 10
      %s195 = sadd.s32 %s193, %s194
      %s196 = smul.addr %s195, 4
      %s197 = scalar_lea.vmem %s0, %s196
      %p198 = pneg %p50
      %p199 = pneg %p47
      %p200 = pneg %p71
      %p201 = pneg %p68
      %p202 = pneg %p92
      %p203 = pneg %p89
      %p204 = pneg %p113
      %p205 = pneg %p110
      %p206 = pneg %p141
      %p207 = pneg %p138
      %s208 = smul.u32 2, %s20
      %p209 = scmp.lt.s32.totalorder %s19, 1
      %s210 = scalar_select %p209, %s19, 1
      %p211 = scmp.lt.s32.totalorder %s208, 1
      %s212 = scalar_select %p211, %s208, 1
      %s213 = smul.addr %s210, 2
      %s214 = sadd.s32 %s212, %s213
      %s215 = smul.addr %s214, 8
      %s216 = scalar_lea.vmem %s4, %s215
      %s217 = smul.u32 2, %s20
      %p218 = scmp.lt.s32.totalorder %s19, 1
      %s219 = scalar_select %p218, %s19, 1
      %p220 = scmp.lt.s32.totalorder %s217, 1
      %s221 = scalar_select %p220, %s217, 1
      %s222 = smul.addr %s219, 10
      %s223 = sadd.s32 %s221, %s222
      %s224 = smul.addr %s223, 4
      %s225 = scalar_lea.vmem %s0, %s224
      %s226 = smul.u32 2, %s20
      %s227 = smul.u32 2, %s20
      %p228 = scmp.lt.s32.totalorder %s19, 1
      %s229 = scalar_select %p228, %s19, 1
      %p230 = scmp.lt.s32.totalorder %s227, 1
      %s231 = scalar_select %p230, %s227, 1
      %s232 = smul.addr %s229, 2
      %s233 = sadd.s32 %s231, %s232
      %s234 = smul.addr %s233, 8
      %s235 = scalar_lea.vmem %s4, %s234
      %s236 = smul.u32 2, %s20
      %v238 = vld [vmem:[%s1] sm:$0xf]
      %v239 = vld [vmem:[%s225] sm:$0xff]
      %v240 = vld [vmem:[%s225 + $0x8] sm:$0xff]
      %v241 = vld [vmem:[%s225 + $0x10] sm:$0xff]
      %v242 = vld [vmem:[%s225 + $0x18] sm:$0xff]
      %v243 = vld [vmem:[%s225 + $0x20] sm:$0xff]
      %v249 = vunpack.c.l.b16 %v239
      %v250 = vunpack.c.h.b16 %v239
      %v251 = vunpack.c.l.b16 %v240
      %v252 = vunpack.c.h.b16 %v240
      %v253 = vunpack.c.l.b16 %v241
      %v254 = vunpack.c.h.b16 %v241
      %v255 = vunpack.c.l.b16 %v242
      %v256 = vunpack.c.h.b16 %v242
      %v257 = vunpack.c.l.b16 %v243
      %v258 = vunpack.c.h.b16 %v243
      %v259 = vpack.c.b16 %v251, %v249
      %v260 = vpack.c.b16 %v252, %v250
      %v261 = vpack.c.b16 %v255, %v253
      %v262 = vpack.c.b16 %v256, %v254
      %v263 = vpack.c.b16 %v257, %v257
      %v264 = vpack.c.b16 %v258, %v258
      %vm269 = vcmask 326656
      %v271 = vsel %vm269, %v238, 0
      %vm273 = vcmask 1043456
      %v275 = vsel %vm273, %v263, 0
      %v278 = vsel %vm273, %v264, 0
      %280 = vmatprep.subr.bf16.mxu0 0
      %281 = vmatpush1.bf16.msra.mxu0 0
      %282 = vmatprep.subr.bf16.mxu0 0
      %283 = vmatpush1.bf16.msra.mxu0 0
      %284 = vmatprep.subr.bf16.mxu0 0
      %285 = vmatpush1.bf16.msra.mxu0 0
      %286 = vmatprep.subr.bf16.mxu0 0
      %287 = vmatpush1.bf16.msra.mxu0 0
      %288 = vmatprep.subr.bf16.mxu0 0
      %289 = vmatpush1.bf16.msra.mxu0 0
      %290 = vmatprep.subr.bf16.mxu0 %v278
      %291 = vmatpush1.bf16.msra.mxu0 %v275
      %292 = vmatprep.subr.bf16.mxu0 %v262
      %293 = vmatpush1.bf16.msra.mxu0 %v261
      %294 = vmatprep.subr.bf16.mxu0 %v260
      %295 = vmatpush1.bf16.msra.mxu0 %v259
      %296 = vmatprep.subr.bf16.mxu0 0
      %297 = vmatpush2.bf16.msra.mxu0 0
      %298 = vmatprep.subr.bf16.mxu0 0
      %299 = vmatpush2.bf16.msra.mxu0 0
      %300 = vmatprep.subr.bf16.mxu0 0
      %301 = vmatpush2.bf16.msra.mxu0 0
      %302 = vmatprep.subr.bf16.mxu0 0
      %303 = vmatpush2.bf16.msra.mxu0 0
      %304 = vmatprep.subr.bf16.mxu0 0
      %305 = vmatpush2.bf16.msra.mxu0 0
      %306 = vmatprep.subr.bf16.mxu0 0
      %307 = vmatpush2.bf16.msra.mxu0 0
      %308 = vmatprep.subr.bf16.mxu0 0
      %309 = vmatpush2.bf16.msra.mxu0 0
      %310 = vmatprep.subr.bf16.mxu0 0
      %311 = vmatpush2.bf16.msra.mxu0 0
      %312 = vmatprep.mubr.bf16.mxu0 0
      %313 = vmatmul.mubr.bf16.gmra.mxu0 %v271
      %v314 = vpop.f32.mrf.mxu0
      %v315 = vadd.f32 0.0, %v314
      %v316 = vpop.f32.mrf.mxu0
      %v317 = vadd.f32 0.0, %v316
      %v318 = vpop.f32.mrf.mxu0
      %v319 = vpop.f32.mrf.mxu0
      %320 = vdwg.mxu0
      %v321 = vld [vmem:[%s2] sm:$0xff]
      %323 = vset.pattern.permute.xlu0 0
      %324 = vperm.xlu0 %323, %v321
      %v325 = vpop.permute.xlu0 %324
      %v327 = vmul.f32 %v315, %v325
      %v328 = vmul.f32 %v317, %v325
      %v329 = vld [vmem:[%s3] sm:$0xff]
      %331 = vset.pattern.permute.xlu0 0
      %332 = vperm.xlu0 %331, %v329
      %v333 = vpop.permute.xlu0 %332
      %v335 = vadd.f32 %v327, %v333
      %v336 = vadd.f32 %v328, %v333
      %337 = vst [vmem:[%s235] sm:$0xff] %v335
      %338 = vst [vmem:[%s235 + $0x8] sm:$0xff] %v336
      %s339 = smul.u32 2, %s20
      %p340 = scmp.lt.s32.totalorder %s19, 1
      %s341 = scalar_select %p340, %s19, 1
      %p342 = scmp.lt.s32.totalorder %s339, 1
      %s343 = scalar_select %p342, %s339, 1
      %s344 = smul.addr %s341, 2
      %s345 = sadd.s32 %s343, %s344
      %s346 = smul.addr %s345, 8
      %s347 = scalar_lea.vmem %s4, %s346
      // Predicated region
      $region37: #{conv2d_batchnorm.3} parent=35 // pred_check
        %p348 = pneg %p138
      $region38: #{conv2d_batchnorm.3} parent=35 // pred_check_branch
        %350 = sbr.rel (%p348) target = $region40
      $region39: #{conv2d_batchnorm.3} parent=35 // pred_region
        %s351 = smul.u32 2, %s20
      $region40: #{conv2d_batchnorm.3} parent=35 // pred_fallthru
        _
    $region36: #{conv2d_batchnorm.3} parent=5 // pred_fallthru
      _
    %p352 = scmp.le.s32.totalorder 2, %s10
    // Predicated region
    $region41: #{conv2d_batchnorm.3} parent=5 // pred_check
      %p353 = pneg %p352
    $region42: #{conv2d_batchnorm.3} parent=5 // pred_check_branch
      %355 = sbr.rel (%p353) target = $region44
    $region43: #{conv2d_batchnorm.3} parent=5 // pred_region
      %s356 = ssub.s32 %s10, 2
      // Predicated region
      $region45: #{conv2d_batchnorm.3} parent=43 // pred_check
        %p357 = pneg %p144
      $region46: #{conv2d_batchnorm.3} parent=43 // pred_check_branch
        %359 = sbr.rel (%p357) target = $region48
      $region47: #{conv2d_batchnorm.3} parent=43 // pred_region
        %s360 = smul.u32 2, %s22
        %p361 = scmp.lt.s32.totalorder %s21, 1
        %s362 = scalar_select %p361, %s21, 1
        %p363 = scmp.lt.s32.totalorder %s360, 1
        %s364 = scalar_select %p363, %s360, 1
        %s365 = smul.addr %s362, 2
        %s366 = sadd.s32 %s364, %s365
        %s367 = smul.addr %s366, 8
        %s368 = scalar_lea.vmem %s4, %s367
      $region48: #{conv2d_batchnorm.3} parent=43 // pred_fallthru
        _
    $region44: #{conv2d_batchnorm.3} parent=5 // pred_fallthru
      _
  $region6: #{conv2d_batchnorm.3} parent=0 // loop_footer
    %s14 = sadd.s32 1, %s10
  $region7: #{conv2d_batchnorm.3} parent=0 // loop_footer_branch
    %9 = sbr.rel target = $region3
  $region8: #{conv2d_batchnorm.3} parent=0 // loop_exit
    _

</llo_original>
